<compile_context>
chip_gen: v7x
topology: tpu7x:2x2x1
jax: 0.10.0
libtpu: 0.0.40
codegen_flags: <defaults>
</compile_context>

<pallas_src>
import numpy as np
import jax
import jax.numpy as jnp
from jax import lax
from jax.experimental import pallas as pl
from jax.experimental.pallas import tpu as pltpu

# ----------------------------- configuration ------------------------------- #
INPUT_DIM = 4                                # action dimensionality
HIDDEN_DIM = 128                             # fc1 width (lane-dense)
EMBED_DIM = 32                               # embed_dim
MIN_DEG, MAX_DEG = 0, 10
N_FREQ = MAX_DEG - MIN_DEG                   # 10 frequency bands
FEAT_DIM = INPUT_DIM * (2 * N_FREQ + 1)      # 84 = fc1 input width
OUT_DIM = EMBED_DIM * INPUT_DIM              # 128 = fc2 / LayerNorm width (lane-dense)
LN_EPS = 1e-5                                # nn.LayerNorm default eps
MAX_BLOCK_M = 512                            # token rows per grid step (VMEM-friendly)


# ------------------------------ Pallas kernel ------------------------------ #
def _action_encoder_kernel(x_ref, w1_ref, b1_ref, w2_ref, b2_ref,
                           g_ref, beta_ref, o_ref):
    """Fused fc1 -> (eval dropout = identity) -> fc2 -> SiLU -> LayerNorm.

    x block: (TM, FEAT_DIM); weights/biases are grid-invariant full blocks.
    """
    x = x_ref[...].astype(jnp.float32)                                    # (TM, 84)

    h = jnp.dot(x, w1_ref[...], preferred_element_type=jnp.float32) + b1_ref[...]
    # nn.Dropout(0.1) is the identity in eval mode.
    h = jnp.dot(h, w2_ref[...], preferred_element_type=jnp.float32) + b2_ref[...]

    # final_block = SiLU() then LayerNorm(embed_dim * input_dim)
    s = h * jax.nn.sigmoid(h)                                             # SiLU (EUP logistic)
    mu = jnp.mean(s, axis=-1, keepdims=True)
    d = s - mu
    var = jnp.mean(d * d, axis=-1, keepdims=True)                         # two-pass variance
    y = d * lax.rsqrt(var + LN_EPS) * g_ref[...] + beta_ref[...]

    o_ref[...] = y.astype(o_ref.dtype)


# ------------------------------ JAX-side glue ------------------------------ #
def positional_encoding(x):
    """Matches PositionalEncoding.forward exactly (sin(a + pi/2) == cos(a))."""
    # TODO(synk): sin is computed here in plain JAX -- lax.sin has no guaranteed Mosaic
    # lowering inside a Pallas TPU kernel; the feature map is tiny and element-wise.
    scales = jnp.asarray([2.0 ** i for i in range(MIN_DEG, MAX_DEG)], dtype=x.dtype)
    lead = x.shape[:-1]
    x_enc = (x[..., None, :] * scales[:, None]).reshape(*lead, -1)        # (..., 40)
    x_enc = jnp.concatenate([x_enc, x_enc + 0.5 * jnp.pi], axis=-1)       # (..., 80)
    return jnp.concatenate([jnp.sin(x_enc), x], axis=-1)                  # (..., 84)


def _round_up(n, m):
    return ((n + m - 1) // m) * m


def action_encoder_forward(x, params):
    lead = x.shape[:-1]
    feat = positional_encoding(x).reshape(-1, FEAT_DIM)                   # (M, 84)
    M = feat.shape[0]

    tm = min(MAX_BLOCK_M, _round_up(M, 8))                                # sublane-aligned tile
    n_blocks = pl.cdiv(M, tm)
    m_pad = n_blocks * tm
    if m_pad != M:
        feat = jnp.pad(feat, ((0, m_pad - M), (0, 0)))

    weight_specs = [
        pl.BlockSpec((FEAT_DIM, HIDDEN_DIM), lambda i: (0, 0)),   # w1 (resident)
        pl.BlockSpec((1, HIDDEN_DIM), lambda i: (0, 0)),          # b1
        pl.BlockSpec((HIDDEN_DIM, OUT_DIM), lambda i: (0, 0)),    # w2 (resident)
        pl.BlockSpec((1, OUT_DIM), lambda i: (0, 0)),             # b2
        pl.BlockSpec((1, OUT_DIM), lambda i: (0, 0)),             # ln gamma
        pl.BlockSpec((1, OUT_DIM), lambda i: (0, 0)),             # ln beta
    ]

    # Advisory cost estimate for XLA's scheduler around the custom call.
    flops = 2 * m_pad * (FEAT_DIM * HIDDEN_DIM + HIDDEN_DIM * OUT_DIM) + 8 * m_pad * OUT_DIM
    transcendentals = m_pad * OUT_DIM + m_pad                             # sigmoid + rsqrt
    bytes_accessed = 4 * (m_pad * FEAT_DIM + m_pad * OUT_DIM
                          + FEAT_DIM * HIDDEN_DIM + HIDDEN_DIM * OUT_DIM + 4 * OUT_DIM)

    out = pl.pallas_call(
        _action_encoder_kernel,
        grid=(n_blocks,),
        in_specs=[pl.BlockSpec((tm, FEAT_DIM), lambda i: (i, 0))] + weight_specs,
        out_specs=pl.BlockSpec((tm, OUT_DIM), lambda i: (i, 0)),
        out_shape=jax.ShapeDtypeStruct((m_pad, OUT_DIM), x.dtype),
        compiler_params=pltpu.CompilerParams(dimension_semantics=("parallel",)),
        cost_estimate=pl.CostEstimate(flops=flops,
                                      transcendentals=transcendentals,
                                      bytes_accessed=bytes_accessed),
    )(feat, params['w1'], params['b1'], params['w2'], params['b2'],
      params['ln_g'], params['ln_b'])

    return out[:M].reshape(*lead, EMBED_DIM, INPUT_DIM)


def action_encoder_reference(x, params):
    """Pure-JAX reference (same math) for an in-script correctness check."""
    feat = positional_encoding(x)
    h = feat @ params['w1'] + params['b1'][0]
    h = h @ params['w2'] + params['b2'][0]
    s = h * jax.nn.sigmoid(h)
    mu = jnp.mean(s, axis=-1, keepdims=True)
    var = jnp.mean(jnp.square(s - mu), axis=-1, keepdims=True)
    y = (s - mu) * lax.rsqrt(var + LN_EPS) * params['ln_g'][0] + params['ln_b'][0]
    return y.reshape(*x.shape[:-1], EMBED_DIM, INPUT_DIM)


def init_params(key):
    k1, k2 = jax.random.split(key)

    def linear_init(k, fan_in, fan_out):
        bound = 1.0 / float(np.sqrt(fan_in))
        kw, kb = jax.random.split(k)
        w = jax.random.uniform(kw, (fan_in, fan_out), jnp.float32, -bound, bound)
        b = jax.random.uniform(kb, (1, fan_out), jnp.float32, -bound, bound)
        return w, b

    w1, b1 = linear_init(k1, FEAT_DIM, HIDDEN_DIM)
    w2, b2 = linear_init(k2, HIDDEN_DIM, OUT_DIM)
    return {
        'w1': w1, 'b1': b1,
        'w2': w2, 'b2': b2,
        'ln_g': jnp.ones((1, OUT_DIM), jnp.float32),   # nn.LayerNorm affine defaults
        'ln_b': jnp.zeros((1, OUT_DIM), jnp.float32),
    }


# ---------------------------------- main ------------------------------------ #
if __name__ == "__main__":
    key = jax.random.PRNGKey(0)
    kx, kp = jax.random.split(key)

    B, S = 2, 8
    x = jax.random.normal(kx, (B, S, INPUT_DIM), dtype=jnp.float32)
    params = init_params(kp)

    fwd = jax.jit(action_encoder_forward)
    out = jax.block_until_ready(fwd(x, params))

    expected = (B, S, EMBED_DIM, INPUT_DIM)
    assert out.shape == expected, (out.shape, expected)
    assert bool(jnp.all(jnp.isfinite(out)))

    ref = action_encoder_reference(x, params)
    max_err = float(jnp.max(jnp.abs(out - ref)))
    assert max_err < 5e-2, f"max abs err vs reference: {max_err}"

    print("KERNEL_OK")
</pallas_src>

<mosaic_0001>
module attributes {stable_mosaic.version = 11 : i64} {
  func.func @_action_encoder_kernel(%arg0: i32, %arg1: memref<16x84xf32, #tpu.memory_space<vmem>>, %arg2: memref<84x128xf32, #tpu.memory_space<vmem>>, %arg3: memref<1x128xf32, #tpu.memory_space<vmem>>, %arg4: memref<128x128xf32, #tpu.memory_space<vmem>>, %arg5: memref<1x128xf32, #tpu.memory_space<vmem>>, %arg6: memref<1x128xf32, #tpu.memory_space<vmem>>, %arg7: memref<1x128xf32, #tpu.memory_space<vmem>>, %arg8: memref<16x128xf32, #tpu.memory_space<vmem>>) attributes {dimension_semantics = [#tpu.dimension_semantics<parallel>], iteration_bounds = array<i64: 1>, scalar_prefetch = 0 : i64, scratch_operands = 0 : i64, tpu.core_type = #tpu.core_type<tc>, window_params = [{transform_indices = @transform_0, window_bounds = array<i64: 16, 84>}, {pipeline_mode = #tpu.pipeline_mode<synchronous>, transform_indices = @transform_1, window_bounds = array<i64: 84, 128>}, {pipeline_mode = #tpu.pipeline_mode<synchronous>, transform_indices = @transform_2, window_bounds = array<i64: 1, 128>}, {pipeline_mode = #tpu.pipeline_mode<synchronous>, transform_indices = @transform_3, window_bounds = array<i64: 128, 128>}, {pipeline_mode = #tpu.pipeline_mode<synchronous>, transform_indices = @transform_4, window_bounds = array<i64: 1, 128>}, {pipeline_mode = #tpu.pipeline_mode<synchronous>, transform_indices = @transform_5, window_bounds = array<i64: 1, 128>}, {pipeline_mode = #tpu.pipeline_mode<synchronous>, transform_indices = @transform_6, window_bounds = array<i64: 1, 128>}, {transform_indices = @transform_7, window_bounds = array<i64: 16, 128>}]} {
    %c0 = arith.constant 0 : index
    %c0_0 = arith.constant 0 : index
    %0 = vector.load %arg1[%c0, %c0_0] : memref<16x84xf32, #tpu.memory_space<vmem>>, vector<16x84xf32>
    %c0_1 = arith.constant 0 : index
    %c0_2 = arith.constant 0 : index
    %1 = vector.load %arg2[%c0_1, %c0_2] : memref<84x128xf32, #tpu.memory_space<vmem>>, vector<84x128xf32>
    %cst = arith.constant dense<0.000000e+00> : vector<16x128xf32>
    %2 = tpu.matmul %0, %1, %cst {dimension_numbers = #tpu.dot_dimension_numbers<[1], [0], [0], [1], [0, 0, 1, 1], [], []>} : vector<16x84xf32>, vector<84x128xf32>, vector<16x128xf32> -> vector<16x128xf32>
    %c0_3 = arith.constant 0 : index
    %c0_4 = arith.constant 0 : index
    %3 = vector.load %arg3[%c0_3, %c0_4] : memref<1x128xf32, #tpu.memory_space<vmem>>, vector<1x128xf32>
    %4 = vector.broadcast %3 : vector<1x128xf32> to vector<16x128xf32>
    %5 = arith.addf %2, %4 : vector<16x128xf32>
    %c0_5 = arith.constant 0 : index
    %c0_6 = arith.constant 0 : index
    %6 = vector.load %arg4[%c0_5, %c0_6] : memref<128x128xf32, #tpu.memory_space<vmem>>, vector<128x128xf32>
    %cst_7 = arith.constant dense<0.000000e+00> : vector<16x128xf32>
    %7 = tpu.matmul %5, %6, %cst_7 {dimension_numbers = #tpu.dot_dimension_numbers<[1], [0], [0], [1], [0, 0, 1, 1], [], []>} : vector<16x128xf32>, vector<128x128xf32>, vector<16x128xf32> -> vector<16x128xf32>
    %c0_8 = arith.constant 0 : index
    %c0_9 = arith.constant 0 : index
    %8 = vector.load %arg5[%c0_8, %c0_9] : memref<1x128xf32, #tpu.memory_space<vmem>>, vector<1x128xf32>
    %9 = vector.broadcast %8 : vector<1x128xf32> to vector<16x128xf32>
    %10 = arith.addf %7, %9 : vector<16x128xf32>
    %11 = arith.negf %10 : vector<16x128xf32>
    %12 = math.exp %11 : vector<16x128xf32>
    %cst_10 = arith.constant 1.000000e+00 : f32
    %13 = vector.broadcast %cst_10 : f32 to vector<16x128xf32>
    %14 = arith.addf %13, %12 : vector<16x128xf32>
    %15 = arith.divf %13, %14 : vector<16x128xf32>
    %16 = arith.mulf %10, %15 : vector<16x128xf32>
    %cst_11 = arith.constant dense<0.000000e+00> : vector<16xf32>
    %17 = vector.multi_reduction <add>, %16, %cst_11 [1] : vector<16x128xf32> to vector<16xf32>
    %18 = vector.shape_cast %17 : vector<16xf32> to vector<16x1xf32>
    %cst_12 = arith.constant 1.280000e+02 : f32
    %19 = vector.broadcast %cst_12 : f32 to vector<16x1xf32>
    %20 = arith.divf %18, %19 : vector<16x1xf32>
    %21 = vector.broadcast %20 : vector<16x1xf32> to vector<16x128xf32>
    %22 = arith.subf %16, %21 : vector<16x128xf32>
    %23 = arith.mulf %22, %22 : vector<16x128xf32>
    %cst_13 = arith.constant dense<0.000000e+00> : vector<16xf32>
    %24 = vector.multi_reduction <add>, %23, %cst_13 [1] : vector<16x128xf32> to vector<16xf32>
    %25 = vector.shape_cast %24 : vector<16xf32> to vector<16x1xf32>
    %cst_14 = arith.constant 1.280000e+02 : f32
    %26 = vector.broadcast %cst_14 : f32 to vector<16x1xf32>
    %27 = arith.divf %25, %26 : vector<16x1xf32>
    %cst_15 = arith.constant 9.99999974E-6 : f32
    %28 = vector.broadcast %cst_15 : f32 to vector<16x1xf32>
    %29 = arith.addf %27, %28 : vector<16x1xf32>
    %30 = math.rsqrt %29 : vector<16x1xf32>
    %31 = vector.broadcast %30 : vector<16x1xf32> to vector<16x128xf32>
    %32 = arith.mulf %22, %31 : vector<16x128xf32>
    %c0_16 = arith.constant 0 : index
    %c0_17 = arith.constant 0 : index
    %33 = vector.load %arg6[%c0_16, %c0_17] : memref<1x128xf32, #tpu.memory_space<vmem>>, vector<1x128xf32>
    %34 = vector.broadcast %33 : vector<1x128xf32> to vector<16x128xf32>
    %35 = arith.mulf %32, %34 : vector<16x128xf32>
    %c0_18 = arith.constant 0 : index
    %c0_19 = arith.constant 0 : index
    %36 = vector.load %arg7[%c0_18, %c0_19] : memref<1x128xf32, #tpu.memory_space<vmem>>, vector<1x128xf32>
    %37 = vector.broadcast %36 : vector<1x128xf32> to vector<16x128xf32>
    %38 = arith.addf %35, %37 : vector<16x128xf32>
    %c0_20 = arith.constant 0 : index
    %c0_21 = arith.constant 0 : index
    %39 = vector.load %arg8[%c0_20, %c0_21] : memref<16x128xf32, #tpu.memory_space<vmem>>, vector<16x128xf32>
    tpu.vector_store %arg8[%c0_20, %c0_21], %38 {strides = array<i32>} : memref<16x128xf32, #tpu.memory_space<vmem>>, vector<16x128xf32>,
    return
  }
  func.func @transform_0(%arg0: i32) -> (i32, i32) {
    %c0_i32 = arith.constant 0 : i32
    %c0_i32_0 = arith.constant 0 : i32
    return %arg0, %c0_i32 : i32, i32
  }
  func.func @transform_1(%arg0: i32) -> (i32, i32) {
    %c0_i32 = arith.constant 0 : i32
    %c0_i32_0 = arith.constant 0 : i32
    %c0_i32_1 = arith.constant 0 : i32
    return %c0_i32, %c0_i32_0 : i32, i32
  }
  func.func @transform_2(%arg0: i32) -> (i32, i32) {
    %c0_i32 = arith.constant 0 : i32
    %c0_i32_0 = arith.constant 0 : i32
    %c0_i32_1 = arith.constant 0 : i32
    return %c0_i32, %c0_i32_0 : i32, i32
  }
  func.func @transform_3(%arg0: i32) -> (i32, i32) {
    %c0_i32 = arith.constant 0 : i32
    %c0_i32_0 = arith.constant 0 : i32
    %c0_i32_1 = arith.constant 0 : i32
    return %c0_i32, %c0_i32_0 : i32, i32
  }
  func.func @transform_4(%arg0: i32) -> (i32, i32) {
    %c0_i32 = arith.constant 0 : i32
    %c0_i32_0 = arith.constant 0 : i32
    %c0_i32_1 = arith.constant 0 : i32
    return %c0_i32, %c0_i32_0 : i32, i32
  }
  func.func @transform_5(%arg0: i32) -> (i32, i32) {
    %c0_i32 = arith.constant 0 : i32
    %c0_i32_0 = arith.constant 0 : i32
    %c0_i32_1 = arith.constant 0 : i32
    return %c0_i32, %c0_i32_0 : i32, i32
  }
  func.func @transform_6(%arg0: i32) -> (i32, i32) {
    %c0_i32 = arith.constant 0 : i32
    %c0_i32_0 = arith.constant 0 : i32
    %c0_i32_1 = arith.constant 0 : i32
    return %c0_i32, %c0_i32_0 : i32, i32
  }
  func.func @transform_7(%arg0: i32) -> (i32, i32) {
    %c0_i32 = arith.constant 0 : i32
    %c0_i32_0 = arith.constant 0 : i32
    return %arg0, %c0_i32 : i32, i32
  }
}

</mosaic_0001>

<llo_original>
// kernel: action_encoder_forward.1
$region0: #{action_encoder_forward.1}
  #allocation0 [shape = 'u32[]', space=smem, size = 0x4, offset = 0x4, fixed_abs, tag = 'smem constant byte address 0x4 - core index']
  #allocation1 [shape = 'u32[144,128]{1,0:T(1,128)}', space=vmem, size = 0x12000, scoped, tag = 'internal scratch']
  %s0 = inlined_call_operand.vmem [shape: f32[16,84], index: 0, kind: input, shape index: {}]
  %s1 = inlined_call_operand.vmem [shape: f32[84,128], index: 1, kind: input, shape index: {}]
  %s2 = inlined_call_operand.vmem [shape: f32[1,128], index: 2, kind: input, shape index: {}]
  %s3 = inlined_call_operand.vmem [shape: f32[128,128], index: 3, kind: input, shape index: {}]
  %s4 = inlined_call_operand.vmem [shape: f32[1,128], index: 4, kind: input, shape index: {}]
  %s5 = inlined_call_operand.vmem [shape: f32[1,128], index: 5, kind: input, shape index: {}]
  %s6 = inlined_call_operand.vmem [shape: f32[1,128], index: 6, kind: input, shape index: {}]
  %s7 = inlined_call_operand.vmem [shape: f32[16,128], index: 7, kind: output, shape index: {}]
  %s8 = sld [smem:[#allocation0]]
  $region38: #{action_encoder_forward.1} parent=0
    _
  %s10 = ssub.s32 1, %s8
  %s11 = scalar_select 0, %s10, %s8
  // Predicated region
  $region2: #{action_encoder_forward.1} parent=0 // pred_check
    _
  $region3: #{action_encoder_forward.1} parent=0 // pred_check_branch
    %13 = sbr.rel (0) target = $region5
  $region4: #{action_encoder_forward.1} parent=0 // pred_region
    _
  $region5: #{action_encoder_forward.1} parent=0 // pred_fallthru
    _
  // Predicated region
  $region6: #{action_encoder_forward.1} parent=0 // pred_check
    _
  $region7: #{action_encoder_forward.1} parent=0 // pred_check_branch
    %15 = sbr.rel (0) target = $region9
  $region8: #{action_encoder_forward.1} parent=0 // pred_region
    _
  $region9: #{action_encoder_forward.1} parent=0 // pred_fallthru
    _
  // Predicated region
  $region10: #{action_encoder_forward.1} parent=0 // pred_check
    _
  $region11: #{action_encoder_forward.1} parent=0 // pred_check_branch
    %17 = sbr.rel (0) target = $region13
  $region12: #{action_encoder_forward.1} parent=0 // pred_region
    _
  $region13: #{action_encoder_forward.1} parent=0 // pred_fallthru
    _
  // Predicated region
  $region14: #{action_encoder_forward.1} parent=0 // pred_check
    _
  $region15: #{action_encoder_forward.1} parent=0 // pred_check_branch
    %19 = sbr.rel (0) target = $region17
  $region16: #{action_encoder_forward.1} parent=0 // pred_region
    _
  $region17: #{action_encoder_forward.1} parent=0 // pred_fallthru
    _
  // Predicated region
  $region18: #{action_encoder_forward.1} parent=0 // pred_check
    _
  $region19: #{action_encoder_forward.1} parent=0 // pred_check_branch
    %21 = sbr.rel (0) target = $region21
  $region20: #{action_encoder_forward.1} parent=0 // pred_region
    _
  $region21: #{action_encoder_forward.1} parent=0 // pred_fallthru
    _
  // Predicated region
  $region22: #{action_encoder_forward.1} parent=0 // pred_check
    _
  $region23: #{action_encoder_forward.1} parent=0 // pred_check_branch
    %23 = sbr.rel (0) target = $region25
  $region24: #{action_encoder_forward.1} parent=0 // pred_region
    _
  $region25: #{action_encoder_forward.1} parent=0 // pred_fallthru
    _
  // Predicated region
  $region26: #{action_encoder_forward.1} parent=0 // pred_check
    _
  $region27: #{action_encoder_forward.1} parent=0 // pred_check_branch
    %25 = sbr.rel (0) target = $region29
  $region28: #{action_encoder_forward.1} parent=0 // pred_region
    _
  $region29: #{action_encoder_forward.1} parent=0 // pred_fallthru
    _
  %v26 = vld [vmem:[%s0] sm:$0xff]
  %v27 = vld [vmem:[%s0 + $0x8] sm:$0xff]
  %v28 = vld [vmem:[%s1] sm:$0xff]
  %v29 = vld [vmem:[%s1 + $0x8] sm:$0xff]
  %v30 = vld [vmem:[%s1 + $0x10] sm:$0xff]
  %v31 = vld [vmem:[%s1 + $0x18] sm:$0xff]
  %v32 = vld [vmem:[%s1 + $0x20] sm:$0xff]
  %v33 = vld [vmem:[%s1 + $0x28] sm:$0xff]
  %v34 = vld [vmem:[%s1 + $0x30] sm:$0xff]
  %v35 = vld [vmem:[%s1 + $0x38] sm:$0xff]
  %v36 = vld [vmem:[%s1 + $0x40] sm:$0xff]
  %v37 = vld [vmem:[%s1 + $0x48] sm:$0xff]
  %v38 = vld [vmem:[%s1 + $0x50] sm:$0xf]
  %v39 = vld [vmem:[%s2] sm:$0x1]
  %v41 = vlaneseq
  %v42 = vshrl.u32 %v41, 7
  %v43 = vsub.s32 0, %v42
  %v44 = vrot.slane %v39, %v43
  %vm46 = vcmask 687104
  %v48 = vsel %vm46, %v26, 0
  %v51 = vsel %vm46, %v27, 0
  %vm53 = vcmask 1043456
  %v55 = vsel %vm53, %v38, 0
  %57 = vmatprep.subr.mxu0 0.0
  %58 = vmatpush1.msra.mxu0 %v28
  %59 = vmatprep.subr.mxu0 0.0
  %60 = vmatpush1.msra.mxu0 %v29
  %61 = vmatprep.subr.mxu0 0.0
  %62 = vmatpush1.msra.mxu0 %v30
  %63 = vmatprep.subr.mxu0 0.0
  %64 = vmatpush1.msra.mxu0 %v31
  %65 = vmatprep.subr.mxu0 0.0
  %66 = vmatpush1.msra.mxu0 %v32
  %67 = vmatprep.subr.mxu0 0.0
  %68 = vmatpush1.msra.mxu0 %v33
  %69 = vmatprep.subr.mxu0 0.0
  %70 = vmatpush1.msra.mxu0 %v34
  %71 = vmatprep.subr.mxu0 0.0
  %72 = vmatpush1.msra.mxu0 %v35
  %73 = vmatprep.subr.mxu0 0.0
  %74 = vmatpush1.msra.mxu0 %v36
  %75 = vmatprep.subr.mxu0 0.0
  %76 = vmatpush1.msra.mxu0 %v37
  %77 = vmatprep.subr.mxu0 0.0
  %78 = vmatpush1.msra.mxu0 %v55
  %79 = vmatprep.subr.mxu0 0.0
  %80 = vmatpush1.msra.mxu0 0.0
  %81 = vmatprep.subr.mxu0 0.0
  %82 = vmatpush1.msra.mxu0 0.0
  %83 = vmatprep.subr.mxu0 0.0
  %84 = vmatpush1.msra.mxu0 0.0
  %85 = vmatprep.subr.mxu0 0.0
  %86 = vmatpush1.msra.mxu0 0.0
  %87 = vmatprep.subr.mxu0 0.0
  %88 = vmatpush1.msra.mxu0 0.0
  %89 = vmatprep.subr.mxu0 0.0
  %90 = vmatpush1.msra.mxu0 0.0
  %91 = vmatprep.subr.mxu0 0.0
  %92 = vmatpush1.msra.mxu0 0.0
  %93 = vmatprep.subr.mxu0 0.0
  %94 = vmatpush1.msra.mxu0 0.0
  %95 = vmatprep.subr.mxu0 0.0
  %96 = vmatpush1.msra.mxu0 0.0
  %97 = vmatprep.subr.mxu0 0.0
  %98 = vmatpush1.msra.mxu0 0.0
  %99 = vmatprep.subr.mxu0 0.0
  %100 = vmatpush1.msra.mxu0 0.0
  %101 = vmatprep.subr.mxu0 0.0
  %102 = vmatpush1.msra.mxu0 0.0
  %103 = vmatprep.subr.mxu0 0.0
  %104 = vmatpush1.msra.mxu0 0.0
  %105 = vmatprep.subr.mxu0 0.0
  %106 = vmatpush1.msra.mxu0 0.0
  %107 = vmatprep.subr.mxu0 0.0
  %108 = vmatpush1.msra.mxu0 0.0
  %109 = vmatprep.subr.mxu0 0.0
  %110 = vmatpush1.msra.mxu0 0.0
  %111 = vmatprep.subr.mxu0 0.0
  %112 = vmatpush1.msra.mxu0 0.0
  %113 = vmatprep.subr.mxu0 0.0
  %114 = vmatpush1.msra.mxu0 0.0
  %115 = vmatprep.subr.mxu0 0.0
  %116 = vmatpush1.msra.mxu0 0.0
  %117 = vmatprep.subr.mxu0 0.0
  %118 = vmatpush1.msra.mxu0 0.0
  %119 = vmatprep.subr.mxu0 0.0
  %120 = vmatpush1.msra.mxu0 0.0
  %121 = vmatprep.mubr.f32.mxu0 0.0
  %122 = vmatmul.mubr.f32.gmra.mrb[0].mxu0 %v48
  %v123 = vpop.f32.mrb[0].mxu0
  %v124 = vadd.f32 %v44, %v123
  %v125 = vpop.f32.mrb[0].mxu0
  %126 = vmatprep.mubr.f32.mxu0 0.0
  %127 = vmatmul.mubr.f32.gmra.mrb[0].mxu0 %v51
  %v128 = vpop.f32.mrb[0].mxu0
  %v129 = vadd.f32 %v44, %v128
  %v130 = vpop.f32.mrb[0].mxu0
  %131 = vdwg.mxu0
  %v132 = vld [vmem:[%s3] sm:$0xff]
  %v133 = vld [vmem:[%s3 + $0x8] sm:$0xff]
  %v134 = vld [vmem:[%s3 + $0x10] sm:$0xff]
  %v135 = vld [vmem:[%s3 + $0x18] sm:$0xff]
  %v136 = vld [vmem:[%s3 + $0x20] sm:$0xff]
  %v137 = vld [vmem:[%s3 + $0x28] sm:$0xff]
  %v138 = vld [vmem:[%s3 + $0x30] sm:$0xff]
  %v139 = vld [vmem:[%s3 + $0x38] sm:$0xff]
  %v140 = vld [vmem:[%s3 + $0x40] sm:$0xff]
  %v141 = vld [vmem:[%s3 + $0x48] sm:$0xff]
  %v142 = vld [vmem:[%s3 + $0x50] sm:$0xff]
  %v143 = vld [vmem:[%s3 + $0x58] sm:$0xff]
  %v144 = vld [vmem:[%s3 + $0x60] sm:$0xff]
  %v145 = vld [vmem:[%s3 + $0x68] sm:$0xff]
  %v146 = vld [vmem:[%s3 + $0x70] sm:$0xff]
  %v147 = vld [vmem:[%s3 + $0x78] sm:$0xff]
  %v148 = vld [vmem:[%s4] sm:$0x1]
  %v150 = vlaneseq
  %v151 = vshrl.u32 %v150, 7
  %v152 = vsub.s32 0, %v151
  %v153 = vrot.slane %v148, %v152
  %155 = vmatprep.subr.mxu0 0.0
  %156 = vmatpush1.msra.mxu0 %v132
  %157 = vmatprep.subr.mxu0 0.0
  %158 = vmatpush1.msra.mxu0 %v133
  %159 = vmatprep.subr.mxu0 0.0
  %160 = vmatpush1.msra.mxu0 %v134
  %161 = vmatprep.subr.mxu0 0.0
  %162 = vmatpush1.msra.mxu0 %v135
  %163 = vmatprep.subr.mxu0 0.0
  %164 = vmatpush1.msra.mxu0 %v136
  %165 = vmatprep.subr.mxu0 0.0
  %166 = vmatpush1.msra.mxu0 %v137
  %167 = vmatprep.subr.mxu0 0.0
  %168 = vmatpush1.msra.mxu0 %v138
  %169 = vmatprep.subr.mxu0 0.0
  %170 = vmatpush1.msra.mxu0 %v139
  %171 = vmatprep.subr.mxu0 0.0
  %172 = vmatpush1.msra.mxu0 %v140
  %173 = vmatprep.subr.mxu0 0.0
  %174 = vmatpush1.msra.mxu0 %v141
  %175 = vmatprep.subr.mxu0 0.0
  %176 = vmatpush1.msra.mxu0 %v142
  %177 = vmatprep.subr.mxu0 0.0
  %178 = vmatpush1.msra.mxu0 %v143
  %179 = vmatprep.subr.mxu0 0.0
  %180 = vmatpush1.msra.mxu0 %v144
  %181 = vmatprep.subr.mxu0 0.0
  %182 = vmatpush1.msra.mxu0 %v145
  %183 = vmatprep.subr.mxu0 0.0
  %184 = vmatpush1.msra.mxu0 %v146
  %185 = vmatprep.subr.mxu0 0.0
  %186 = vmatpush1.msra.mxu0 %v147
  %187 = vmatprep.subr.mxu0 0.0
  %188 = vmatpush1.msra.mxu0 0.0
  %189 = vmatprep.subr.mxu0 0.0
  %190 = vmatpush1.msra.mxu0 0.0
  %191 = vmatprep.subr.mxu0 0.0
  %192 = vmatpush1.msra.mxu0 0.0
  %193 = vmatprep.subr.mxu0 0.0
  %194 = vmatpush1.msra.mxu0 0.0
  %195 = vmatprep.subr.mxu0 0.0
  %196 = vmatpush1.msra.mxu0 0.0
  %197 = vmatprep.subr.mxu0 0.0
  %198 = vmatpush1.msra.mxu0 0.0
  %199 = vmatprep.subr.mxu0 0.0
  %200 = vmatpush1.msra.mxu0 0.0
  %201 = vmatprep.subr.mxu0 0.0
  %202 = vmatpush1.msra.mxu0 0.0
  %203 = vmatprep.subr.mxu0 0.0
  %204 = vmatpush1.msra.mxu0 0.0
  %205 = vmatprep.subr.mxu0 0.0
  %206 = vmatpush1.msra.mxu0 0.0
  %207 = vmatprep.subr.mxu0 0.0
  %208 = vmatpush1.msra.mxu0 0.0
  %209 = vmatprep.subr.mxu0 0.0
  %210 = vmatpush1.msra.mxu0 0.0
  %211 = vmatprep.subr.mxu0 0.0
  %212 = vmatpush1.msra.mxu0 0.0
  %213 = vmatprep.subr.mxu0 0.0
  %214 = vmatpush1.msra.mxu0 0.0
  %215 = vmatprep.subr.mxu0 0.0
  %216 = vmatpush1.msra.mxu0 0.0
  %217 = vmatprep.subr.mxu0 0.0
  %218 = vmatpush1.msra.mxu0 0.0
  %219 = vmatprep.mubr.f32.mxu0 0.0
  %220 = vmatmul.mubr.f32.gmra.mrb[0].mxu0 %v124
  %v221 = vpop.f32.mrb[0].mxu0
  %v222 = vadd.f32 %v153, %v221
  %v223 = vpop.f32.mrb[0].mxu0
  %224 = vmatprep.mubr.f32.mxu0 0.0
  %225 = vmatmul.mubr.f32.gmra.mrb[0].mxu0 %v129
  %v226 = vpop.f32.mrb[0].mxu0
  %v227 = vadd.f32 %v153, %v226
  %v228 = vpop.f32.mrb[0].mxu0
  %229 = vdwg.mxu0
  %v230 = vxor.u32 %v222, 2147483648
  %v231 = vxor.u32 %v227, 2147483648
  %v232 = vmul.f32 %v230, 1.442695
  %v233 = vpow.pop %v232
  %v234 = vmul.f32 %v231, 1.442695
  %v235 = vpow.pop %v234
  %v236 = vadd.f32 %v233, 1.0
  %v237 = vadd.f32 %v235, 1.0
  %v238 = vrcp.pop %v236
  %v239 = vmul.f32 1.0, %v238
  %v240 = vrcp.pop %v237
  %v241 = vmul.f32 1.0, %v240
  %v242 = vmul.f32 %v222, %v239
  %v243 = vmul.f32 %v227, %v241
  %244 = vadd.xlane.f32.xlu0 %v242
  %v245 = vpop.xlane.xlu0 %244
  %246 = vadd.xlane.f32.xlu0 %v243
  %v247 = vpop.xlane.xlu0 %246
  %v248 = vrcp.pop 128.0
  %v249 = vmul.f32 %v245, %v248
  %v250 = vmul.f32 %v247, %v248
  %v251 = vsub.f32 %v242, %v249
  %v252 = vsub.f32 %v243, %v250
  %v253 = vmul.f32 %v251, %v251
  %v254 = vmul.f32 %v252, %v252
  %255 = vadd.xlane.f32.xlu0 %v253
  %v256 = vpop.xlane.xlu0 %255
  %257 = vadd.xlane.f32.xlu0 %v254
  %v258 = vpop.xlane.xlu0 %257
  %v259 = vmul.f32 %v256, %v248
  %v260 = vmul.f32 %v258, %v248
  %v261 = vadd.f32 %v259, 1e-05
  %v262 = vadd.f32 %v260, 1e-05
  %v263 = vrsqrt.pop %v261
  %v264 = vrsqrt.pop %v262
  %v265 = vmul.f32 %v251, %v263
  %v266 = vmul.f32 %v252, %v264
  %v267 = vld [vmem:[%s5] sm:$0x1]
  %v269 = vlaneseq
  %v270 = vshrl.u32 %v269, 7
  %v271 = vsub.s32 0, %v270
  %v272 = vrot.slane %v267, %v271
  %v274 = vmul.f32 %v265, %v272
  %v275 = vmul.f32 %v266, %v272
  %v276 = vld [vmem:[%s6] sm:$0x1]
  %v278 = vlaneseq
  %v279 = vshrl.u32 %v278, 7
  %v280 = vsub.s32 0, %v279
  %v281 = vrot.slane %v276, %v280
  %v283 = vadd.f32 %v274, %v281
  %v284 = vadd.f32 %v275, %v281
  %285 = vst [vmem:[%s7] sm:$0xff] %v283
  %286 = vst [vmem:[%s7 + $0x8] sm:$0xff] %v284
  // Predicated region
  $region30: #{action_encoder_forward.1} parent=0 // pred_check
    _
  $region31: #{action_encoder_forward.1} parent=0 // pred_check_branch
    %288 = sbr.rel (0) target = $region33
  $region32: #{action_encoder_forward.1} parent=0 // pred_region
    _
  $region33: #{action_encoder_forward.1} parent=0 // pred_fallthru
    _
  // Predicated region
  $region34: #{action_encoder_forward.1} parent=0 // pred_check
    _
  $region35: #{action_encoder_forward.1} parent=0 // pred_check_branch
    %290 = sbr.rel (0) target = $region37
  $region36: #{action_encoder_forward.1} parent=0 // pred_region
    _
  $region37: #{action_encoder_forward.1} parent=0 // pred_fallthru
    _

</llo_original>
